<compile_context>
chip_gen: v7x
topology: tpu7x:2x2x1
jax: 0.10.0
libtpu: 0.0.40
codegen_flags: <defaults>
</compile_context>

<pallas_src>
import math
from functools import partial

import jax
import jax.numpy as jnp
from jax.experimental import pallas as pl
from jax.experimental.pallas import tpu as pltpu

LANE = 128          # lane width: feature dims padded to multiples of this
SUBLANE_BF16 = 16   # bf16 sublane packing: batch padded to multiples of this


def _round_up(x, m):
    return ((x + m - 1) // m) * m


def _pick_tile(dim, candidates):
    """Largest candidate tile that divides `dim` (dim is already padded)."""
    for t in candidates:
        if t <= dim and dim % t == 0:
            return t
    return dim


# ----------------------------------------------------------------------------
# Fused Linear (+bias, +optional ReLU) Pallas kernel
# ----------------------------------------------------------------------------
def _fused_linear_kernel(x_ref, w_ref, b_ref, o_ref, acc_ref, *, relu):
    k = pl.program_id(2)

    @pl.when(k == 0)
    def _init():
        acc_ref[...] = jnp.zeros_like(acc_ref)

    acc_ref[...] += jnp.dot(x_ref[...], w_ref[...],
                            preferred_element_type=jnp.float32)

    @pl.when(k == pl.num_programs(2) - 1)
    def _finalize():
        y = acc_ref[...] + b_ref[...]
        if relu:
            y = jnp.maximum(y, 0.0)
        o_ref[...] = y.astype(o_ref.dtype)


def pallas_linear(x, w, b, *, relu, out_dtype):
    """y = [relu](x @ w + b).

    x: (M, K) bf16, w: (K, N) bf16, b: (1, N) f32.  All dims pre-padded:
    M % 16 == 0, K % 128 == 0, N % 128 == 0 (zero padding keeps math exact).
    """
    M, K = x.shape
    Kw, N = w.shape
    assert K == Kw and b.shape == (1, N)

    tm = _pick_tile(M, (256, 128, 64, 32, 16))
    tn = _pick_tile(N, (256, 128))
    tk = _pick_tile(K, (512, 384, 256, 128))
    grid = (M // tm, N // tn, K // tk)

    return pl.pallas_call(
        partial(_fused_linear_kernel, relu=relu),
        out_shape=jax.ShapeDtypeStruct((M, N), out_dtype),
        grid_spec=pltpu.PrefetchScalarGridSpec(
            num_scalar_prefetch=0,
            grid=grid,
            in_specs=[
                pl.BlockSpec((tm, tk), lambda i, j, k: (i, k)),
                pl.BlockSpec((tk, tn), lambda i, j, k: (k, j)),
                pl.BlockSpec((1, tn), lambda i, j, k: (0, j)),
            ],
            out_specs=pl.BlockSpec((tm, tn), lambda i, j, k: (i, j)),
            scratch_shapes=[pltpu.VMEM((tm, tn), jnp.float32)],
        ),
        compiler_params=pltpu.CompilerParams(
            dimension_semantics=("parallel", "parallel", "arbitrary"),
            vmem_limit_bytes=32 * 1024 * 1024,
        ),
    )(x, w, b)


# ----------------------------------------------------------------------------
# MLP parameters (Xavier init, matching the PyTorch module) and forward
# ----------------------------------------------------------------------------
def init_mlp_params(key, sizes):
    """Weights stored as (in, out), zero-padded to lane-dense (128-multiple)
    shapes and cast to bf16 for the MXU; biases kept f32."""
    sizes = [int(s) for s in sizes]
    padded = [_round_up(s, LANE) for s in sizes]
    keys = jax.random.split(key, len(sizes) - 1)
    params = []
    for i in range(len(sizes) - 1):
        fan_in, fan_out = sizes[i], sizes[i + 1]
        std = 1.0 * math.sqrt(2.0 / (fan_in + fan_out))
        a = math.sqrt(3.0) * std
        w = jax.random.uniform(keys[i], (fan_in, fan_out), jnp.float32,
                               minval=-a, maxval=a)
        wp = jnp.zeros((padded[i], padded[i + 1]), jnp.float32)
        wp = wp.at[:fan_in, :fan_out].set(w)
        bp = jnp.zeros((1, padded[i + 1]), jnp.float32)   # bias init = 0
        params.append({'w': wp.astype(jnp.bfloat16), 'b': bp})
    return params, sizes, padded


def mlp_forward(x, params, sizes, padded):
    """x: (batch, sizes[0]) f32 -> (batch, sizes[-1]) f32."""
    M = x.shape[0]
    Mp = _round_up(M, SUBLANE_BF16)
    if Mp >= 256:
        Mp = _round_up(Mp, 256)

    # Pad batch and input features once; activations stay padded (lane-dense)
    # through every layer and are sliced back only at the end.
    h = jnp.zeros((Mp, padded[0]), jnp.bfloat16)
    h = h.at[:M, :sizes[0]].set(x.astype(jnp.bfloat16))

    n_layers = len(params)
    for i, layer in enumerate(params):
        last = (i == n_layers - 1)
        h = pallas_linear(
            h, layer['w'], layer['b'],
            relu=not last,                                 # ReLU between layers only
            out_dtype=jnp.float32 if last else jnp.bfloat16,
        )
    return h[:M, :sizes[-1]]


def mlp_reference(x, params, sizes, padded):
    """Pure-JAX f32 reference using the same (bf16-cast) weights."""
    M = x.shape[0]
    h = jnp.zeros((M, padded[0]), jnp.float32).at[:, :sizes[0]].set(x)
    n_layers = len(params)
    for i, layer in enumerate(params):
        h = h @ layer['w'].astype(jnp.float32) + layer['b']
        if i < n_layers - 1:
            h = jnp.maximum(h, 0.0)
    return h[:, :sizes[-1]]


# ----------------------------------------------------------------------------
if __name__ == "__main__":
    sizes = [32, 256, 128, 10]      # MLP(sizes): Linear->ReLU->Linear->ReLU->Linear
    batch = 8

    key = jax.random.PRNGKey(0)
    kp, kx = jax.random.split(key)
    params, sizes, padded = init_mlp_params(kp, sizes)
    x = jax.random.normal(kx, (batch, sizes[0]), jnp.float32)

    y = mlp_forward(x, params, sizes, padded)
    y = jax.block_until_ready(y)

    assert y.shape == (batch, sizes[-1]), y.shape
    assert bool(jnp.all(jnp.isfinite(y)))

    # Loose tolerance: kernel path uses bf16 operands / bf16 intermediate
    # activations with f32 accumulation; reference is f32 throughout.
    y_ref = mlp_reference(x, params, sizes, padded)
    assert bool(jnp.allclose(y, y_ref, rtol=1e-1, atol=1e-1))

    print("KERNEL_OK")
</pallas_src>

<mosaic_0001>
module attributes {stable_mosaic.version = 11 : i64} {
  func.func @_fused_linear_kernel(%arg0: i32, %arg1: i32, %arg2: i32, %arg3: memref<16x128xbf16, #tpu.memory_space<vmem>>, %arg4: memref<128x256xbf16, #tpu.memory_space<vmem>>, %arg5: memref<1x256xf32, #tpu.memory_space<vmem>>, %arg6: memref<16x256xbf16, #tpu.memory_space<vmem>>, %arg7: memref<16x256xf32, #tpu.memory_space<vmem>>) attributes {dimension_semantics = [#tpu.dimension_semantics<parallel>, #tpu.dimension_semantics<parallel>, #tpu.dimension_semantics<arbitrary>], iteration_bounds = array<i64: 1, 1, 1>, scalar_prefetch = 0 : i64, scratch_operands = 1 : i64, tpu.core_type = #tpu.core_type<tc>, window_params = [{transform_indices = @transform_0, window_bounds = array<i64: 16, 128>}, {transform_indices = @transform_1, window_bounds = array<i64: 128, 256>}, {transform_indices = @transform_2, window_bounds = array<i64: 1, 256>}, {transform_indices = @transform_3, window_bounds = array<i64: 16, 256>}]} {
    %c0_i32 = arith.constant 0 : i32
    %0 = arith.cmpi eq, %arg2, %c0_i32 : i32
    %1 = arith.extui %0 : i1 to i32
    %c0_i32_0 = arith.constant 0 : i32
    %2 = arith.cmpi ne, %1, %c0_i32_0 : i32
    scf.if %2 {
      %cst_10 = arith.constant 0.000000e+00 : f32
      %12 = vector.broadcast %cst_10 : f32 to vector<16x256xf32>
      %c0_11 = arith.constant 0 : index
      %c0_12 = arith.constant 0 : index
      %13 = vector.load %arg7[%c0_11, %c0_12] : memref<16x256xf32, #tpu.memory_space<vmem>>, vector<16x256xf32>
      tpu.vector_store %arg7[%c0_11, %c0_12], %12 {strides = array<i32>} : memref<16x256xf32, #tpu.memory_space<vmem>>, vector<16x256xf32>,
    } else {
    }
    %c0 = arith.constant 0 : index
    %c0_1 = arith.constant 0 : index
    %3 = vector.load %arg7[%c0, %c0_1] : memref<16x256xf32, #tpu.memory_space<vmem>>, vector<16x256xf32>
    %c0_2 = arith.constant 0 : index
    %c0_3 = arith.constant 0 : index
    %4 = vector.load %arg3[%c0_2, %c0_3] : memref<16x128xbf16, #tpu.memory_space<vmem>>, vector<16x128xbf16>
    %c0_4 = arith.constant 0 : index
    %c0_5 = arith.constant 0 : index
    %5 = vector.load %arg4[%c0_4, %c0_5] : memref<128x256xbf16, #tpu.memory_space<vmem>>, vector<128x256xbf16>
    %cst = arith.constant dense<0.000000e+00> : vector<16x256xf32>
    %6 = tpu.matmul %4, %5, %cst {dimension_numbers = #tpu.dot_dimension_numbers<[1], [0], [0], [1], [0, 0, 1, 1], [], []>} : vector<16x128xbf16>, vector<128x256xbf16>, vector<16x256xf32> -> vector<16x256xf32>
    %7 = arith.addf %3, %6 : vector<16x256xf32>
    %c0_6 = arith.constant 0 : index
    %c0_7 = arith.constant 0 : index
    %8 = vector.load %arg7[%c0_6, %c0_7] : memref<16x256xf32, #tpu.memory_space<vmem>>, vector<16x256xf32>
    tpu.vector_store %arg7[%c0_6, %c0_7], %7 {strides = array<i32>} : memref<16x256xf32, #tpu.memory_space<vmem>>, vector<16x256xf32>,
    %c0_i32_8 = arith.constant 0 : i32
    %9 = arith.cmpi eq, %arg2, %c0_i32_8 : i32
    %10 = arith.extui %9 : i1 to i32
    %c0_i32_9 = arith.constant 0 : i32
    %11 = arith.cmpi ne, %10, %c0_i32_9 : i32
    scf.if %11 {
      %c0_10 = arith.constant 0 : index
      %c0_11 = arith.constant 0 : index
      %12 = vector.load %arg7[%c0_10, %c0_11] : memref<16x256xf32, #tpu.memory_space<vmem>>, vector<16x256xf32>
      %c0_12 = arith.constant 0 : index
      %c0_13 = arith.constant 0 : index
      %13 = vector.load %arg5[%c0_12, %c0_13] : memref<1x256xf32, #tpu.memory_space<vmem>>, vector<1x256xf32>
      %14 = vector.broadcast %13 : vector<1x256xf32> to vector<16x256xf32>
      %15 = arith.addf %12, %14 : vector<16x256xf32>
      %cst_14 = arith.constant 0.000000e+00 : f32
      %16 = vector.broadcast %cst_14 : f32 to vector<16x256xf32>
      %17 = arith.maximumf %15, %16 : vector<16x256xf32>
      %18 = arith.truncf %17 : vector<16x256xf32> to vector<16x256xbf16>
      %c0_15 = arith.constant 0 : index
      %c0_16 = arith.constant 0 : index
      %19 = vector.load %arg6[%c0_15, %c0_16] : memref<16x256xbf16, #tpu.memory_space<vmem>>, vector<16x256xbf16>
      tpu.vector_store %arg6[%c0_15, %c0_16], %18 {strides = array<i32>} : memref<16x256xbf16, #tpu.memory_space<vmem>>, vector<16x256xbf16>,
    } else {
    }
    return
  }
  func.func @transform_0(%arg0: i32, %arg1: i32, %arg2: i32) -> (i32, i32) {
    %c0_i32 = arith.constant 0 : i32
    return %arg0, %arg2 : i32, i32
  }
  func.func @transform_1(%arg0: i32, %arg1: i32, %arg2: i32) -> (i32, i32) {
    %c0_i32 = arith.constant 0 : i32
    return %arg2, %arg1 : i32, i32
  }
  func.func @transform_2(%arg0: i32, %arg1: i32, %arg2: i32) -> (i32, i32) {
    %c0_i32 = arith.constant 0 : i32
    %c0_i32_0 = arith.constant 0 : i32
    return %c0_i32, %arg1 : i32, i32
  }
  func.func @transform_3(%arg0: i32, %arg1: i32, %arg2: i32) -> (i32, i32) {
    %c0_i32 = arith.constant 0 : i32
    return %arg0, %arg1 : i32, i32
  }
}

</mosaic_0001>

<llo_original>
// kernel: tpu_custom_call.1
$region0: #{tpu_custom_call.1}
  #allocation0 [shape = 'u32[]', space=smem, size = 0x4, offset = 0x4, fixed_abs, tag = 'smem constant byte address 0x4 - core index']
  #allocation1 [shape = 'u32[144,128]{1,0:T(1,128)}', space=vmem, size = 0x12000, scoped, tag = 'internal scratch']
  #allocation2 [shape = 'f32[16,256]{1,0:T(8,128)}', space=vmem, size = 0x4000, scoped, tag = 'scratch operand']
  %s0 = inlined_call_operand.hbm [shape: bf16[16,128], index: 0, kind: input, shape index: {}]
  %s1 = inlined_call_operand.hbm [shape: bf16[128,256], index: 1, kind: input, shape index: {}]
  %s2 = inlined_call_operand.vmem [shape: f32[1,256], index: 2, kind: input, shape index: {}]
  %s3 = inlined_call_operand.hbm [shape: bf16[16,256], index: 3, kind: output, shape index: {}]
  %s4 = sld [smem:[#allocation0]]
  $region38: #{tpu_custom_call.1} parent=0
    _
  %s6 = ssub.s32 1, %s4
  %s7 = scalar_select 0, %s6, %s4
  $region1: #{tpu_custom_call.1} parent=0
    #allocation3 [shape = 'u8[4096]{0}', space=vmem, size = 0x1000, scoped, tag = 'input window, operand 0, single buffered']
    #allocation4 [shape = 's32[1]{0}', space=sflag, size = 0x4, scoped, tag = 'scoped memory for tpu_custom_call.1']
    #allocation5 [shape = 's32[1]{0}', space=sflag, size = 0x4, scoped, tag = 'scoped memory for tpu_custom_call.1']
    #allocation6 [shape = 'u8[65536]{0}', space=vmem, size = 0x10000, scoped, tag = 'input window, operand 1, single buffered']
    #allocation7 [shape = 's32[1]{0}', space=sflag, size = 0x4, scoped, tag = 'scoped memory for tpu_custom_call.1']
    #allocation8 [shape = 'u8[8192]{0}', space=vmem, size = 0x2000, scoped, tag = 'output window, operand 0, single buffered']
    %8 = vsyncpa [#allocation4], 0
    %9 = vsyncpa [#allocation7], 0
    %10 = vsyncpa [#allocation5], 0
    // Predicated region
    $region2: #{tpu_custom_call.1} parent=1 // pred_check
      _
    $region3: #{tpu_custom_call.1} parent=1 // pred_check_branch
      %12 = sbr.rel (0) target = $region5
    $region4: #{tpu_custom_call.1} parent=1 // pred_region
      %s14 = ssub.s32 128, 128
      %15 = vsyncadd [#allocation4], %s14
      %s16 = sshll.u32 [#allocation3], 4
      %s17 = int_to_ptr.vmem [resolvable:$true] %s16
      %22 = dma.hbm_to_vmem [thread:$0]  %s0, 128, %s17, [#allocation4], 64, 64, 4
    $region5: #{tpu_custom_call.1} parent=1 // pred_fallthru
      _
    // Predicated region
    $region6: #{tpu_custom_call.1} parent=1 // pred_check
      _
    $region7: #{tpu_custom_call.1} parent=1 // pred_check_branch
      %24 = sbr.rel (0) target = $region9
    $region8: #{tpu_custom_call.1} parent=1 // pred_region
      %s26 = ssub.s32 2048, 2048
      %27 = vsyncadd [#allocation7], %s26
      %s28 = sshll.u32 [#allocation6], 4
      %s29 = int_to_ptr.vmem [resolvable:$true] %s28
      %34 = dma.hbm_to_vmem [thread:$0]  %s1, 2048, %s29, [#allocation7], 128, 128, 8
    $region9: #{tpu_custom_call.1} parent=1 // pred_fallthru
      _
    // Predicated region
    $region10: #{tpu_custom_call.1} parent=1 // pred_check
      _
    $region11: #{tpu_custom_call.1} parent=1 // pred_check_branch
      %36 = sbr.rel (0) target = $region13
    $region12: #{tpu_custom_call.1} parent=1 // pred_region
      _
    $region13: #{tpu_custom_call.1} parent=1 // pred_fallthru
      _
    // Predicated region
    $region14: #{tpu_custom_call.1} parent=1 // pred_check
      _
    $region15: #{tpu_custom_call.1} parent=1 // pred_check_branch
      %38 = sbr.rel (0) target = $region17
    $region16: #{tpu_custom_call.1} parent=1 // pred_region
      %39 = dma.done [#allocation4], 128
    $region17: #{tpu_custom_call.1} parent=1 // pred_fallthru
      _
    // Predicated region
    $region18: #{tpu_custom_call.1} parent=1 // pred_check
      _
    $region19: #{tpu_custom_call.1} parent=1 // pred_check_branch
      %41 = sbr.rel (0) target = $region21
    $region20: #{tpu_custom_call.1} parent=1 // pred_region
      %42 = dma.done [#allocation7], 2048
    $region21: #{tpu_custom_call.1} parent=1 // pred_fallthru
      _
    %p44 = scmp.eq.s32.totalorder 0, 0
    // Predicated region
    $region22: #{tpu_custom_call.1} parent=1 // pred_check
      %p45 = pneg %p44
    $region23: #{tpu_custom_call.1} parent=1 // pred_check_branch
      %47 = sbr.rel (%p45) target = $region25
    $region24: #{tpu_custom_call.1} parent=1 // pred_region
      %48 = vst [vmem:[#allocation2] sm:$0xff] 0.0
      %49 = vst [vmem:[#allocation2 + $0x8] sm:$0xff] 0.0
      %50 = vst [vmem:[#allocation2 + $0x10] sm:$0xff] 0.0
      %51 = vst [vmem:[#allocation2 + $0x18] sm:$0xff] 0.0
    $region25: #{tpu_custom_call.1} parent=1 // pred_fallthru
      _
    %v52 = vld [vmem:[#allocation2] sm:$0xff]
    %v53 = vld [vmem:[#allocation2 + $0x8] sm:$0xff]
    %v54 = vld [vmem:[#allocation2 + $0x10] sm:$0xff]
    %v55 = vld [vmem:[#allocation2 + $0x18] sm:$0xff]
    %v56 = vld [vmem:[#allocation3] sm:$0xf]
    %v57 = vld [vmem:[#allocation3 + $0x4] sm:$0xf]
    %v58 = vld [vmem:[#allocation6] sm:$0xff]
    %v59 = vld [vmem:[#allocation6 + $0x8] sm:$0xff]
    %v60 = vld [vmem:[#allocation6 + $0x10] sm:$0xff]
    %v61 = vld [vmem:[#allocation6 + $0x18] sm:$0xff]
    %v62 = vld [vmem:[#allocation6 + $0x20] sm:$0xff]
    %v63 = vld [vmem:[#allocation6 + $0x28] sm:$0xff]
    %v64 = vld [vmem:[#allocation6 + $0x30] sm:$0xff]
    %v65 = vld [vmem:[#allocation6 + $0x38] sm:$0xff]
    %v66 = vld [vmem:[#allocation6 + $0x40] sm:$0xff]
    %v67 = vld [vmem:[#allocation6 + $0x48] sm:$0xff]
    %v68 = vld [vmem:[#allocation6 + $0x50] sm:$0xff]
    %v69 = vld [vmem:[#allocation6 + $0x58] sm:$0xff]
    %v70 = vld [vmem:[#allocation6 + $0x60] sm:$0xff]
    %v71 = vld [vmem:[#allocation6 + $0x68] sm:$0xff]
    %v72 = vld [vmem:[#allocation6 + $0x70] sm:$0xff]
    %v73 = vld [vmem:[#allocation6 + $0x78] sm:$0xff]
    %v76 = vunpack.c.l.b16 %v56
    %v77 = vunpack.c.l.b16 %v57
    %v78 = vpack.c.b16 %v77, %v76
    %v96 = vunpack.c.l.b16 %v58
    %v97 = vunpack.c.h.b16 %v58
    %v98 = vunpack.c.l.b16 %v59
    %v99 = vunpack.c.h.b16 %v59
    %v100 = vunpack.c.l.b16 %v60
    %v101 = vunpack.c.h.b16 %v60
    %v102 = vunpack.c.l.b16 %v61
    %v103 = vunpack.c.h.b16 %v61
    %v104 = vunpack.c.l.b16 %v62
    %v105 = vunpack.c.h.b16 %v62
    %v106 = vunpack.c.l.b16 %v63
    %v107 = vunpack.c.h.b16 %v63
    %v108 = vunpack.c.l.b16 %v64
    %v109 = vunpack.c.h.b16 %v64
    %v110 = vunpack.c.l.b16 %v65
    %v111 = vunpack.c.h.b16 %v65
    %v112 = vunpack.c.l.b16 %v66
    %v113 = vunpack.c.h.b16 %v66
    %v114 = vunpack.c.l.b16 %v67
    %v115 = vunpack.c.h.b16 %v67
    %v116 = vunpack.c.l.b16 %v68
    %v117 = vunpack.c.h.b16 %v68
    %v118 = vunpack.c.l.b16 %v69
    %v119 = vunpack.c.h.b16 %v69
    %v120 = vunpack.c.l.b16 %v70
    %v121 = vunpack.c.h.b16 %v70
    %v122 = vunpack.c.l.b16 %v71
    %v123 = vunpack.c.h.b16 %v71
    %v124 = vunpack.c.l.b16 %v72
    %v125 = vunpack.c.h.b16 %v72
    %v126 = vunpack.c.l.b16 %v73
    %v127 = vunpack.c.h.b16 %v73
    %v128 = vpack.c.b16 %v98, %v96
    %v129 = vpack.c.b16 %v99, %v97
    %v130 = vpack.c.b16 %v102, %v100
    %v131 = vpack.c.b16 %v103, %v101
    %v132 = vpack.c.b16 %v106, %v104
    %v133 = vpack.c.b16 %v107, %v105
    %v134 = vpack.c.b16 %v110, %v108
    %v135 = vpack.c.b16 %v111, %v109
    %v136 = vpack.c.b16 %v114, %v112
    %v137 = vpack.c.b16 %v115, %v113
    %v138 = vpack.c.b16 %v118, %v116
    %v139 = vpack.c.b16 %v119, %v117
    %v140 = vpack.c.b16 %v122, %v120
    %v141 = vpack.c.b16 %v123, %v121
    %v142 = vpack.c.b16 %v126, %v124
    %v143 = vpack.c.b16 %v127, %v125
    %160 = vmatprep.subr.bf16.mxu0 %v129
    %161 = vmatpush1.bf16.msra.mxu0 %v128
    %162 = vmatprep.subr.bf16.mxu0 %v131
    %163 = vmatpush1.bf16.msra.mxu0 %v130
    %164 = vmatprep.subr.bf16.mxu0 %v133
    %165 = vmatpush1.bf16.msra.mxu0 %v132
    %166 = vmatprep.subr.bf16.mxu0 %v135
    %167 = vmatpush1.bf16.msra.mxu0 %v134
    %168 = vmatprep.subr.bf16.mxu0 %v137
    %169 = vmatpush1.bf16.msra.mxu0 %v136
    %170 = vmatprep.subr.bf16.mxu0 %v139
    %171 = vmatpush1.bf16.msra.mxu0 %v138
    %172 = vmatprep.subr.bf16.mxu0 %v141
    %173 = vmatpush1.bf16.msra.mxu0 %v140
    %174 = vmatprep.subr.bf16.mxu0 %v143
    %175 = vmatpush1.bf16.msra.mxu0 %v142
    %176 = vmatprep.subr.bf16.mxu0 0
    %177 = vmatpush1.bf16.msra.mxu0 0
    %178 = vmatprep.subr.bf16.mxu0 0
    %179 = vmatpush1.bf16.msra.mxu0 0
    %180 = vmatprep.subr.bf16.mxu0 0
    %181 = vmatpush1.bf16.msra.mxu0 0
    %182 = vmatprep.subr.bf16.mxu0 0
    %183 = vmatpush1.bf16.msra.mxu0 0
    %184 = vmatprep.subr.bf16.mxu0 0
    %185 = vmatpush1.bf16.msra.mxu0 0
    %186 = vmatprep.subr.bf16.mxu0 0
    %187 = vmatpush1.bf16.msra.mxu0 0
    %188 = vmatprep.subr.bf16.mxu0 0
    %189 = vmatpush1.bf16.msra.mxu0 0
    %190 = vmatprep.subr.bf16.mxu0 0
    %191 = vmatpush1.bf16.msra.mxu0 0
    %192 = vmatprep.mubr.bf16.mxu0 0
    %193 = vmatmul.mubr.bf16.gmra.mrb[0].mxu0 %v78
    %v194 = vpop.f32.mrb[0].mxu0
    %v195 = vadd.f32 0.0, %v194
    %v196 = vpop.f32.mrb[0].mxu0
    %v197 = vadd.f32 0.0, %v196
    %v198 = vpop.f32.mrb[0].mxu0
    %v199 = vadd.f32 0.0, %v198
    %v200 = vpop.f32.mrb[0].mxu0
    %v201 = vadd.f32 0.0, %v200
    %202 = vdwg.mxu0
    %v203 = vadd.f32 %v52, %v195
    %v204 = vadd.f32 %v53, %v197
    %v205 = vadd.f32 %v54, %v199
    %v206 = vadd.f32 %v55, %v201
    %207 = vst [vmem:[#allocation2] sm:$0xff] %v203
    %208 = vst [vmem:[#allocation2 + $0x8] sm:$0xff] %v204
    %209 = vst [vmem:[#allocation2 + $0x10] sm:$0xff] %v205
    %210 = vst [vmem:[#allocation2 + $0x18] sm:$0xff] %v206
    // Predicated region
    $region26: #{tpu_custom_call.1} parent=1 // pred_check
      %p211 = pneg %p44
    $region27: #{tpu_custom_call.1} parent=1 // pred_check_branch
      %213 = sbr.rel (%p211) target = $region29
    $region28: #{tpu_custom_call.1} parent=1 // pred_region
      %v214 = vld [vmem:[#allocation2] sm:$0xff]
      %v215 = vld [vmem:[#allocation2 + $0x8] sm:$0xff]
      %v216 = vld [vmem:[#allocation2 + $0x10] sm:$0xff]
      %v217 = vld [vmem:[#allocation2 + $0x18] sm:$0xff]
      %v218 = vld [vmem:[%s2] sm:$0x3]
      %v220 = vlaneseq
      %v221 = vshrl.u32 %v220, 7
      %v222 = vsub.s32 0, %v221
      %v223 = vrot.slane %v218, %v222
      %v224 = vlaneseq
      %v225 = vshrl.u32 %v224, 7
      %v226 = vsub.s32 1, %v225
      %v227 = vrot.slane %v218, %v226
      %v230 = vadd.f32 %v214, %v223
      %v231 = vadd.f32 %v215, %v227
      %v232 = vadd.f32 %v216, %v223
      %v233 = vadd.f32 %v217, %v227
      %v234 = vmax.f32 %v230, 0.0
      %v235 = vmax.f32 %v231, 0.0
      %v236 = vmax.f32 %v232, 0.0
      %v237 = vmax.f32 %v233, 0.0
      %v238 = vpack.c.bf16 %v236, %v234
      %v239 = vpack.c.bf16 %v237, %v235
      %v242 = vunpack.c.l.b16 %v238
      %v243 = vunpack.c.l.b16 %v239
      %v244 = vunpack.c.h.b16 %v238
      %v245 = vunpack.c.h.b16 %v239
      %v246 = vpack.c.b16 %v243, %v242
      %v247 = vpack.c.b16 %v245, %v244
      %250 = vst [vmem:[#allocation8] sm:$0xff] %v246
      %251 = vst [vmem:[#allocation8 + $0x8] sm:$0xff] %v247
    $region29: #{tpu_custom_call.1} parent=1 // pred_fallthru
      _
    // Predicated region
    $region30: #{tpu_custom_call.1} parent=1 // pred_check
      _
    $region31: #{tpu_custom_call.1} parent=1 // pred_check_branch
      %253 = sbr.rel (0) target = $region33
    $region32: #{tpu_custom_call.1} parent=1 // pred_region
      %s255 = ssub.s32 256, 256
      %256 = vsyncadd [#allocation5], %s255
      %s257 = sshll.u32 [#allocation8], 4
      %s258 = int_to_ptr.vmem [resolvable:$true] %s257
      %263 = dma.vmem_to_hbm [thread:$0]  %s258, 256, %s3, [#allocation5], 128, 128, 8
    $region33: #{tpu_custom_call.1} parent=1 // pred_fallthru
      _
    // Predicated region
    $region34: #{tpu_custom_call.1} parent=1 // pred_check
      _
    $region35: #{tpu_custom_call.1} parent=1 // pred_check_branch
      %265 = sbr.rel (0) target = $region37
    $region36: #{tpu_custom_call.1} parent=1 // pred_region
      %266 = dma.done [#allocation5], 256
    $region37: #{tpu_custom_call.1} parent=1 // pred_fallthru
      _
    %267 = vsyncpa [#allocation4], 1
    %268 = vsyncpa [#allocation7], 1
    %269 = vsyncpa [#allocation5], 1

</llo_original>
